<compile_context>
chip_gen: v7x
topology: tpu7x:2x2x1
jax: 0.10.0
libtpu: 0.0.40
codegen_flags: <defaults>
</compile_context>

<pallas_src>
import functools
import math

import jax
import jax.numpy as jnp
from jax.experimental import pallas as pl
from jax.experimental.pallas import tpu as pltpu


# ----------------------------------------------------------------------------
# Fused attention kernel: per-head QKV projection + SDPA + output projection,
# accumulated over the head grid axis into a resident lane-dense output block.
# ----------------------------------------------------------------------------

def _rel_mha_kernel(x_ref, wqkv_ref, bqkv_ref, bias_ref, wo_ref, bo_ref, o_ref,
                    *, batch_tile, seq_len, d_head, scale):
    h = pl.program_id(1)
    Bt, L, Dh = batch_tile, seq_len, d_head
    N = Bt * L
    D = o_ref.shape[-1]

    # Fused per-head QKV projection: one (N, D) x (D, 3*Dh) bf16 MXU matmul with
    # f32 accumulation, then the f32 bias.  N = Bt*L rows (batch folded into block).
    qkv = jnp.dot(x_ref[...], wqkv_ref[0], preferred_element_type=jnp.float32)
    qkv = qkv + bqkv_ref[0]                          # (N, 3*Dh) f32

    bias = bias_ref[0]                               # (L, L) f32, causal -1e30 folded
    wo_h = wo_ref[0]                                 # (Dh, D) bf16

    # Initialize the resident output accumulator with the output-projection bias.
    @pl.when(h == 0)
    def _():
        o_ref[...] = jnp.broadcast_to(bo_ref[...], (N, D))

    # Attention is independent per batch element; static sublane slices over the
    # (small) batch tile.  For realistic L (>=128) pick Bt=1 and this loop vanishes.
    for b in range(Bt):
        lo = b * L
        q = (qkv[lo:lo + L, 0:Dh] * scale).astype(jnp.bfloat16)       # (L, Dh)
        k = qkv[lo:lo + L, Dh:2 * Dh].astype(jnp.bfloat16)            # (L, Dh)
        v = qkv[lo:lo + L, 2 * Dh:3 * Dh].astype(jnp.bfloat16)        # (L, Dh)

        # q @ k^T via dot_general contracting last dims (no materialized transpose).
        s = jax.lax.dot_general(q, k, (((1,), (1,)), ((), ())),
                                preferred_element_type=jnp.float32)   # (L, L) f32
        s = s + bias                                                  # bias + causal mask

        m = jnp.max(s, axis=-1, keepdims=True)
        p = jnp.exp(s - m)
        denom = jnp.sum(p, axis=-1, keepdims=True)
        oh = jnp.dot(p.astype(jnp.bfloat16), v,
                     preferred_element_type=jnp.float32)              # (L, Dh) f32
        oh = oh * pl.reciprocal(denom, approx=False)                  # exact normalize

        # Fused head-concat + output projection: oh @ Wo[h*Dh:(h+1)*Dh, :], then
        # accumulate into the resident lane-dense (N, D) output block.
        contrib = jnp.dot(oh.astype(jnp.bfloat16), wo_h,
                          preferred_element_type=jnp.float32)         # (L, D) f32
        idx = pl.ds(lo, L)
        o_ref[idx, :] = o_ref[idx, :] + contrib


def relative_mha_forward(x, params, bias_masked, n_heads, scale, batch_tile=None):
    """x: (B, L, D) f32 -> (B, L, D) f32.  bias_masked: (H, L, L) f32, causal folded."""
    B, L, D = x.shape
    H = n_heads
    Dh = D // H
    assert D % H == 0
    Bt = B if batch_tile is None else batch_tile
    assert B % Bt == 0
    N = Bt * L

    # ---- one-time parameter repacking (head-major) + bf16 cast of MXU operands ----
    def head_major(w):                       # (D, D) columns -> (H, D, Dh)
        return w.reshape(D, H, Dh).transpose(1, 0, 2)

    wqkv_h = jnp.concatenate(
        [head_major(params["wq"]), head_major(params["wk"]), head_major(params["wv"])],
        axis=-1).astype(jnp.bfloat16)                                  # (H, D, 3*Dh)
    bqkv_h = jnp.concatenate(
        [params["bq"].reshape(H, 1, Dh), params["bk"].reshape(H, 1, Dh),
         params["bv"].reshape(H, 1, Dh)], axis=-1).astype(jnp.float32)  # (H, 1, 3*Dh)
    wo_h = params["wo"].reshape(H, Dh, D).astype(jnp.bfloat16)          # (H, Dh, D)
    bo2d = params["bo"].reshape(1, D).astype(jnp.float32)               # (1, D)

    x2d = x.reshape(B * L, D).astype(jnp.bfloat16)                      # batch folded

    kernel = functools.partial(_rel_mha_kernel, batch_tile=Bt, seq_len=L,
                               d_head=Dh, scale=scale)

    out2d = pl.pallas_call(
        kernel,
        out_shape=jax.ShapeDtypeStruct((B * L, D), jnp.float32),
        grid=(B // Bt, H),
        in_specs=[
            pl.BlockSpec((N, D), lambda bt, h: (bt, 0)),            # x (per batch tile)
            pl.BlockSpec((1, D, 3 * Dh), lambda bt, h: (h, 0, 0)),  # W_qkv head slice
            pl.BlockSpec((1, 1, 3 * Dh), lambda bt, h: (h, 0, 0)),  # b_qkv head slice
            pl.BlockSpec((1, L, L), lambda bt, h: (h, 0, 0)),       # bias+mask head slice
            pl.BlockSpec((1, Dh, D), lambda bt, h: (h, 0, 0)),      # W_out head slice
            pl.BlockSpec((1, D), lambda bt, h: (0, 0)),             # b_out (grid-invariant)
        ],
        out_specs=pl.BlockSpec((N, D), lambda bt, h: (bt, 0)),      # lane-dense, resident over h
        compiler_params=pltpu.CompilerParams(
            dimension_semantics=("parallel", "arbitrary"),
            vmem_limit_bytes=32 * 1024 * 1024),
    )(x2d, wqkv_h, bqkv_h, bias_masked, wo_h, bo2d)
    return out2d.reshape(B, L, D)


# ----------------------------------------------------------------------------
# Relative position bias (precomputed once; bucket math + gather is JAX glue)
# ----------------------------------------------------------------------------
# TODO(synk): the T5 bucket math + embedding gather is data-dependent indexing
# glue; it is precomputed once in plain JAX (static in L/H/buckets) rather than
# re-derived inside the kernel.

def _relative_position_bucket(relative_position, is_causal, num_buckets, max_distance):
    n = -relative_position
    if not is_causal:
        num_buckets = num_buckets // 2
        ret = (n < 0).astype(jnp.int32) * num_buckets
        n = jnp.abs(n)
    else:
        ret = jnp.zeros_like(n)
        n = jnp.maximum(n, 0)
    max_exact = num_buckets // 2
    is_small = n < max_exact
    safe_n = jnp.maximum(n, 1).astype(jnp.float32)
    val_if_large = max_exact + (
        jnp.log(safe_n / max_exact) / math.log(max_distance / max_exact)
        * (num_buckets - max_exact)
    ).astype(jnp.int32)
    val_if_large = jnp.minimum(val_if_large, num_buckets - 1)
    return ret + jnp.where(is_small, n, val_if_large)


def relative_position_bias(rel_emb, qlen, klen, is_causal, num_buckets, max_distance):
    """rel_emb: (num_buckets, n_heads) -> (n_heads, qlen, klen), causal mask folded."""
    context = jnp.arange(qlen, dtype=jnp.int32)[:, None]
    memory = jnp.arange(klen, dtype=jnp.int32)[None, :]
    rel_pos = memory - context
    rp_bucket = _relative_position_bucket(rel_pos, is_causal, num_buckets, max_distance)
    values = rel_emb[rp_bucket]                       # (qlen, klen, H) gather (JAX glue)
    bias = jnp.transpose(values, (2, 0, 1))           # (H, qlen, klen)
    if is_causal:
        row = jnp.arange(qlen, dtype=jnp.int32)[:, None]
        col = jnp.arange(klen, dtype=jnp.int32)[None, :]
        keep = (col <= row)[None, :, :]
        bias = jnp.where(keep, bias, jnp.float32(-1e30))   # fold causal mask
    return bias.astype(jnp.float32)


# ----------------------------------------------------------------------------
# Pure-JAX reference (matches the PyTorch module math), config, params, driver
# ----------------------------------------------------------------------------

def reference_forward(x, params, bias_masked, n_heads, scale):
    B, L, D = x.shape
    H, Dh = n_heads, D // n_heads

    def split(t):
        return t.reshape(B, L, H, Dh).transpose(0, 2, 1, 3)

    q = split(x @ params["wq"] + params["bq"])
    k = split(x @ params["wk"] + params["bk"])
    v = split(x @ params["wv"] + params["bv"])
    s = jnp.einsum("bhld,bhmd->bhlm", q, k) * scale + bias_masked[None]
    p = jax.nn.softmax(s, axis=-1)
    o = jnp.einsum("bhlm,bhmd->bhld", p, v)
    o = o.transpose(0, 2, 1, 3).reshape(B, L, D)
    return o @ params["wo"] + params["bo"]


class Config:
    d_model = 32
    n_heads = 4
    seq_len = 8          # also max_distance for relative buckets
    n_buckets = 32
    is_causal = True
    qkv_bias = True


def init_params(cfg, key):
    std = 0.02
    D, H = cfg.d_model, cfg.n_heads
    keys = jax.random.split(key, 9)

    def normal(k, shape):
        return std * jax.random.normal(k, shape, dtype=jnp.float32)

    # Weights stored (in, out) so y = x @ W + b (same math as nn.Linear with W.T).
    return {
        "wq": normal(keys[0], (D, D)), "bq": normal(keys[1], (D,)),
        "wk": normal(keys[2], (D, D)), "bk": normal(keys[3], (D,)),
        "wv": normal(keys[4], (D, D)), "bv": normal(keys[5], (D,)),
        "wo": normal(keys[6], (D, D)), "bo": normal(keys[7], (D,)),
        "rel_emb": normal(keys[8], (cfg.n_buckets, H)),
    }


if __name__ == "__main__":
    cfg = Config()
    B, L, D, H = 2, cfg.seq_len, cfg.d_model, cfg.n_heads
    Dh = D // H

    key = jax.random.PRNGKey(0)
    pkey, xkey = jax.random.split(key)
    params = init_params(cfg, pkey)
    x = jax.random.normal(xkey, (B, L, D), dtype=jnp.float32)

    # Precompute bias (+ causal mask) once; depends only on static shapes/params.
    bias_masked = relative_position_bias(
        params["rel_emb"], L, L, cfg.is_causal, cfg.n_buckets, cfg.seq_len)

    scale = Dh ** (-0.5)
    out = relative_mha_forward(x, params, bias_masked, H, scale=scale)
    jax.block_until_ready(out)

    ref = reference_forward(x, params, bias_masked, H, scale=scale)
    max_err = float(jnp.max(jnp.abs(out - ref)))

    assert out.shape == (B, L, D)
    assert bool(jnp.all(jnp.isfinite(out)))
    assert max_err < 5e-3, f"max abs error vs f32 reference: {max_err}"
    print("KERNEL_OK")
</pallas_src>

<mosaic_0001>
module attributes {stable_mosaic.version = 11 : i64} {
  func.func @_rel_mha_kernel(%arg0: i32, %arg1: i32, %arg2: memref<16x32xbf16, #tpu.memory_space<vmem>>, %arg3: memref<1x32x24xbf16, #tpu.memory_space<vmem>>, %arg4: memref<1x1x24xf32, #tpu.memory_space<vmem>>, %arg5: memref<1x8x8xf32, #tpu.memory_space<vmem>>, %arg6: memref<1x8x32xbf16, #tpu.memory_space<vmem>>, %arg7: memref<1x32xf32, #tpu.memory_space<vmem>>, %arg8: memref<16x32xf32, #tpu.memory_space<vmem>>) attributes {dimension_semantics = [#tpu.dimension_semantics<parallel>, #tpu.dimension_semantics<arbitrary>], iteration_bounds = array<i64: 1, 4>, scalar_prefetch = 0 : i64, scratch_operands = 0 : i64, tpu.core_type = #tpu.core_type<tc>, window_params = [{transform_indices = @transform_0, window_bounds = array<i64: 16, 32>}, {transform_indices = @transform_1, window_bounds = array<i64: 1, 32, 24>}, {transform_indices = @transform_2, window_bounds = array<i64: 1, 1, 24>}, {transform_indices = @transform_3, window_bounds = array<i64: 1, 8, 8>}, {transform_indices = @transform_4, window_bounds = array<i64: 1, 8, 32>}, {pipeline_mode = #tpu.pipeline_mode<synchronous>, transform_indices = @transform_5, window_bounds = array<i64: 1, 32>}, {transform_indices = @transform_6, window_bounds = array<i64: 16, 32>}]} {
    %c0 = arith.constant 0 : index
    %c0_0 = arith.constant 0 : index
    %0 = vector.load %arg2[%c0, %c0_0] : memref<16x32xbf16, #tpu.memory_space<vmem>>, vector<16x32xbf16>
    %c0_1 = arith.constant 0 : index
    %c0_2 = arith.constant 0 : index
    %c0_3 = arith.constant 0 : index
    %1 = vector.load %arg3[%c0_1, %c0_2, %c0_3] : memref<1x32x24xbf16, #tpu.memory_space<vmem>>, vector<1x32x24xbf16>
    %2 = vector.shape_cast %1 : vector<1x32x24xbf16> to vector<32x24xbf16>
    %cst = arith.constant dense<0.000000e+00> : vector<16x24xf32>
    %3 = tpu.matmul %0, %2, %cst {dimension_numbers = #tpu.dot_dimension_numbers<[1], [0], [0], [1], [0, 0, 1, 1], [], []>} : vector<16x32xbf16>, vector<32x24xbf16>, vector<16x24xf32> -> vector<16x24xf32>
    %c0_4 = arith.constant 0 : index
    %c0_5 = arith.constant 0 : index
    %c0_6 = arith.constant 0 : index
    %4 = vector.load %arg4[%c0_4, %c0_5, %c0_6] : memref<1x1x24xf32, #tpu.memory_space<vmem>>, vector<1x1x24xf32>
    %5 = vector.shape_cast %4 : vector<1x1x24xf32> to vector<1x24xf32>
    %6 = vector.broadcast %5 : vector<1x24xf32> to vector<16x24xf32>
    %7 = arith.addf %3, %6 : vector<16x24xf32>
    %c0_7 = arith.constant 0 : index
    %c0_8 = arith.constant 0 : index
    %c0_9 = arith.constant 0 : index
    %8 = vector.load %arg5[%c0_7, %c0_8, %c0_9] : memref<1x8x8xf32, #tpu.memory_space<vmem>>, vector<1x8x8xf32>
    %9 = vector.shape_cast %8 : vector<1x8x8xf32> to vector<8x8xf32>
    %c0_10 = arith.constant 0 : index
    %c0_11 = arith.constant 0 : index
    %c0_12 = arith.constant 0 : index
    %10 = vector.load %arg6[%c0_10, %c0_11, %c0_12] : memref<1x8x32xbf16, #tpu.memory_space<vmem>>, vector<1x8x32xbf16>
    %11 = vector.shape_cast %10 : vector<1x8x32xbf16> to vector<8x32xbf16>
    %c0_i32 = arith.constant 0 : i32
    %12 = arith.cmpi eq, %arg1, %c0_i32 : i32
    %13 = arith.extui %12 : i1 to i32
    %c0_i32_13 = arith.constant 0 : i32
    %14 = arith.cmpi ne, %13, %c0_i32_13 : i32
    scf.if %14 {
      %c0_33 = arith.constant 0 : index
      %c0_34 = arith.constant 0 : index
      %69 = vector.load %arg7[%c0_33, %c0_34] : memref<1x32xf32, #tpu.memory_space<vmem>>, vector<1x32xf32>
      %70 = vector.shape_cast %69 : vector<1x32xf32> to vector<1x32xf32>
      %71 = vector.broadcast %70 : vector<1x32xf32> to vector<16x32xf32>
      %c0_35 = arith.constant 0 : index
      %c0_36 = arith.constant 0 : index
      %72 = vector.load %arg8[%c0_35, %c0_36] : memref<16x32xf32, #tpu.memory_space<vmem>>, vector<16x32xf32>
      tpu.vector_store %arg8[%c0_35, %c0_36], %71 {strides = array<i32>} : memref<16x32xf32, #tpu.memory_space<vmem>>, vector<16x32xf32>,
    } else {
    }
    %15 = vector.extract_strided_slice %7 {offsets = [0, 0], sizes = [8, 8], strides = [1, 1]} : vector<16x24xf32> to vector<8x8xf32>
    %cst_14 = arith.constant 0.353553385 : f32
    %16 = vector.broadcast %cst_14 : f32 to vector<8x8xf32>
    %17 = arith.mulf %15, %16 : vector<8x8xf32>
    %18 = arith.truncf %17 : vector<8x8xf32> to vector<8x8xbf16>
    %19 = vector.extract_strided_slice %7 {offsets = [0, 8], sizes = [8, 8], strides = [1, 1]} : vector<16x24xf32> to vector<8x8xf32>
    %20 = arith.truncf %19 : vector<8x8xf32> to vector<8x8xbf16>
    %21 = vector.extract_strided_slice %7 {offsets = [0, 16], sizes = [8, 8], strides = [1, 1]} : vector<16x24xf32> to vector<8x8xf32>
    %22 = arith.truncf %21 : vector<8x8xf32> to vector<8x8xbf16>
    %cst_15 = arith.constant dense<0.000000e+00> : vector<8x8xf32>
    %23 = tpu.matmul %18, %20, %cst_15 {dimension_numbers = #tpu.dot_dimension_numbers<[1], [1], [0], [0], [0, 0, 1, 0], [], []>} : vector<8x8xbf16>, vector<8x8xbf16>, vector<8x8xf32> -> vector<8x8xf32>
    %24 = arith.addf %23, %9 : vector<8x8xf32>
    %cst_16 = arith.constant dense<0xFF800000> : vector<8xf32>
    %25 = vector.multi_reduction <maximumf>, %24, %cst_16 [1] : vector<8x8xf32> to vector<8xf32>
    %26 = vector.shape_cast %25 : vector<8xf32> to vector<8x1xf32>
    %27 = vector.broadcast %26 : vector<8x1xf32> to vector<8x8xf32>
    %28 = arith.subf %24, %27 : vector<8x8xf32>
    %29 = math.exp %28 : vector<8x8xf32>
    %cst_17 = arith.constant dense<0.000000e+00> : vector<8xf32>
    %30 = vector.multi_reduction <add>, %29, %cst_17 [1] : vector<8x8xf32> to vector<8xf32>
    %31 = vector.shape_cast %30 : vector<8xf32> to vector<8x1xf32>
    %32 = arith.truncf %29 : vector<8x8xf32> to vector<8x8xbf16>
    %cst_18 = arith.constant dense<0.000000e+00> : vector<8x8xf32>
    %33 = tpu.matmul %32, %22, %cst_18 {dimension_numbers = #tpu.dot_dimension_numbers<[1], [0], [0], [1], [0, 0, 1, 1], [], []>} : vector<8x8xbf16>, vector<8x8xbf16>, vector<8x8xf32> -> vector<8x8xf32>
    %34 = tpu.reciprocal %31 : vector<8x1xf32> -> vector<8x1xf32>
    %35 = vector.broadcast %34 : vector<8x1xf32> to vector<8x8xf32>
    %36 = arith.mulf %33, %35 : vector<8x8xf32>
    %37 = arith.truncf %36 : vector<8x8xf32> to vector<8x8xbf16>
    %cst_19 = arith.constant dense<0.000000e+00> : vector<8x32xf32>
    %38 = tpu.matmul %37, %11, %cst_19 {dimension_numbers = #tpu.dot_dimension_numbers<[1], [0], [0], [1], [0, 0, 1, 1], [], []>} : vector<8x8xbf16>, vector<8x32xbf16>, vector<8x32xf32> -> vector<8x32xf32>
    %c0_20 = arith.constant 0 : index
    %c0_21 = arith.constant 0 : index
    %39 = vector.load %arg8[%c0_20, %c0_21] : memref<16x32xf32, #tpu.memory_space<vmem>>, vector<8x32xf32>
    %40 = arith.addf %39, %38 : vector<8x32xf32>
    %c0_22 = arith.constant 0 : index
    %c0_23 = arith.constant 0 : index
    %41 = vector.load %arg8[%c0_22, %c0_23] : memref<16x32xf32, #tpu.memory_space<vmem>>, vector<8x32xf32>
    tpu.vector_store %arg8[%c0_22, %c0_23], %40 {strides = array<i32>} : memref<16x32xf32, #tpu.memory_space<vmem>>, vector<8x32xf32>,
    %42 = vector.extract_strided_slice %7 {offsets = [8, 0], sizes = [8, 8], strides = [1, 1]} : vector<16x24xf32> to vector<8x8xf32>
    %cst_24 = arith.constant 0.353553385 : f32
    %43 = vector.broadcast %cst_24 : f32 to vector<8x8xf32>
    %44 = arith.mulf %42, %43 : vector<8x8xf32>
    %45 = arith.truncf %44 : vector<8x8xf32> to vector<8x8xbf16>
    %46 = vector.extract_strided_slice %7 {offsets = [8, 8], sizes = [8, 8], strides = [1, 1]} : vector<16x24xf32> to vector<8x8xf32>
    %47 = arith.truncf %46 : vector<8x8xf32> to vector<8x8xbf16>
    %48 = vector.extract_strided_slice %7 {offsets = [8, 16], sizes = [8, 8], strides = [1, 1]} : vector<16x24xf32> to vector<8x8xf32>
    %49 = arith.truncf %48 : vector<8x8xf32> to vector<8x8xbf16>
    %cst_25 = arith.constant dense<0.000000e+00> : vector<8x8xf32>
    %50 = tpu.matmul %45, %47, %cst_25 {dimension_numbers = #tpu.dot_dimension_numbers<[1], [1], [0], [0], [0, 0, 1, 0], [], []>} : vector<8x8xbf16>, vector<8x8xbf16>, vector<8x8xf32> -> vector<8x8xf32>
    %51 = arith.addf %50, %9 : vector<8x8xf32>
    %cst_26 = arith.constant dense<0xFF800000> : vector<8xf32>
    %52 = vector.multi_reduction <maximumf>, %51, %cst_26 [1] : vector<8x8xf32> to vector<8xf32>
    %53 = vector.shape_cast %52 : vector<8xf32> to vector<8x1xf32>
    %54 = vector.broadcast %53 : vector<8x1xf32> to vector<8x8xf32>
    %55 = arith.subf %51, %54 : vector<8x8xf32>
    %56 = math.exp %55 : vector<8x8xf32>
    %cst_27 = arith.constant dense<0.000000e+00> : vector<8xf32>
    %57 = vector.multi_reduction <add>, %56, %cst_27 [1] : vector<8x8xf32> to vector<8xf32>
    %58 = vector.shape_cast %57 : vector<8xf32> to vector<8x1xf32>
    %59 = arith.truncf %56 : vector<8x8xf32> to vector<8x8xbf16>
    %cst_28 = arith.constant dense<0.000000e+00> : vector<8x8xf32>
    %60 = tpu.matmul %59, %49, %cst_28 {dimension_numbers = #tpu.dot_dimension_numbers<[1], [0], [0], [1], [0, 0, 1, 1], [], []>} : vector<8x8xbf16>, vector<8x8xbf16>, vector<8x8xf32> -> vector<8x8xf32>
    %61 = tpu.reciprocal %58 : vector<8x1xf32> -> vector<8x1xf32>
    %62 = vector.broadcast %61 : vector<8x1xf32> to vector<8x8xf32>
    %63 = arith.mulf %60, %62 : vector<8x8xf32>
    %64 = arith.truncf %63 : vector<8x8xf32> to vector<8x8xbf16>
    %cst_29 = arith.constant dense<0.000000e+00> : vector<8x32xf32>
    %65 = tpu.matmul %64, %11, %cst_29 {dimension_numbers = #tpu.dot_dimension_numbers<[1], [0], [0], [1], [0, 0, 1, 1], [], []>} : vector<8x8xbf16>, vector<8x32xbf16>, vector<8x32xf32> -> vector<8x32xf32>
    %c8 = arith.constant 8 : index
    %c0_30 = arith.constant 0 : index
    %66 = vector.load %arg8[%c8, %c0_30] : memref<16x32xf32, #tpu.memory_space<vmem>>, vector<8x32xf32>
    %67 = arith.addf %66, %65 : vector<8x32xf32>
    %c8_31 = arith.constant 8 : index
    %c0_32 = arith.constant 0 : index
    %68 = vector.load %arg8[%c8_31, %c0_32] : memref<16x32xf32, #tpu.memory_space<vmem>>, vector<8x32xf32>
    tpu.vector_store %arg8[%c8_31, %c0_32], %67 {strides = array<i32>} : memref<16x32xf32, #tpu.memory_space<vmem>>, vector<8x32xf32>,
    return
  }
  func.func @transform_0(%arg0: i32, %arg1: i32) -> (i32, i32) {
    %c0_i32 = arith.constant 0 : i32
    %c0_i32_0 = arith.constant 0 : i32
    return %arg0, %c0_i32 : i32, i32
  }
  func.func @transform_1(%arg0: i32, %arg1: i32) -> (i32, i32, i32) {
    %c0_i32 = arith.constant 0 : i32
    %c0_i32_0 = arith.constant 0 : i32
    %c0_i32_1 = arith.constant 0 : i32
    return %arg1, %c0_i32, %c0_i32_0 : i32, i32, i32
  }
  func.func @transform_2(%arg0: i32, %arg1: i32) -> (i32, i32, i32) {
    %c0_i32 = arith.constant 0 : i32
    %c0_i32_0 = arith.constant 0 : i32
    %c0_i32_1 = arith.constant 0 : i32
    return %arg1, %c0_i32, %c0_i32_0 : i32, i32, i32
  }
  func.func @transform_3(%arg0: i32, %arg1: i32) -> (i32, i32, i32) {
    %c0_i32 = arith.constant 0 : i32
    %c0_i32_0 = arith.constant 0 : i32
    %c0_i32_1 = arith.constant 0 : i32
    return %arg1, %c0_i32, %c0_i32_0 : i32, i32, i32
  }
  func.func @transform_4(%arg0: i32, %arg1: i32) -> (i32, i32, i32) {
    %c0_i32 = arith.constant 0 : i32
    %c0_i32_0 = arith.constant 0 : i32
    %c0_i32_1 = arith.constant 0 : i32
    return %arg1, %c0_i32, %c0_i32_0 : i32, i32, i32
  }
  func.func @transform_5(%arg0: i32, %arg1: i32) -> (i32, i32) {
    %c0_i32 = arith.constant 0 : i32
    %c0_i32_0 = arith.constant 0 : i32
    %c0_i32_1 = arith.constant 0 : i32
    return %c0_i32, %c0_i32_0 : i32, i32
  }
  func.func @transform_6(%arg0: i32, %arg1: i32) -> (i32, i32) {
    %c0_i32 = arith.constant 0 : i32
    %c0_i32_0 = arith.constant 0 : i32
    return %arg0, %c0_i32 : i32, i32
  }
}

</mosaic_0001>

<llo_original>
// kernel: tpu_custom_call.1
$region0: #{tpu_custom_call.1}
  #allocation0 [shape = 'u32[]', space=smem, size = 0x4, offset = 0x4, fixed_abs, tag = 'smem constant byte address 0x4 - core index']
  #allocation1 [shape = 'u32[144,128]{1,0:T(1,128)}', space=vmem, size = 0x12000, scoped, tag = 'internal scratch']
  %s0 = inlined_call_operand.vmem [shape: bf16[16,32], index: 0, kind: input, shape index: {}]
  %s1 = inlined_call_operand.vmem [shape: bf16[4,32,24], index: 1, kind: input, shape index: {}]
  %s2 = inlined_call_operand.vmem [shape: f32[4,1,24], index: 2, kind: input, shape index: {}]
  %s3 = inlined_call_operand.vmem [shape: f32[4,8,8], index: 3, kind: input, shape index: {}]
  %s4 = inlined_call_operand.vmem [shape: bf16[4,8,32], index: 4, kind: input, shape index: {}]
  %s5 = inlined_call_operand.vmem [shape: f32[1,32], index: 5, kind: input, shape index: {}]
  %s6 = inlined_call_operand.hbm [shape: f32[16,32], index: 6, kind: output, shape index: {}]
  %s7 = sld [smem:[#allocation0]]
  $region61: #{tpu_custom_call.1} parent=0
    _
  %s9 = ssub.s32 1, %s7
  %s10 = scalar_select 0, %s9, %s7
  $region1: #{tpu_custom_call.1} parent=0
    #allocation2 [shape = 'u8[8192]{0}', space=vmem, size = 0x2000, scoped, tag = 'output window, operand 0, single buffered']
    #allocation3 [shape = 's32[2]{0}', space=sflag, size = 0x8, scoped, tag = 'scoped memory for tpu_custom_call.1']
    %11 = vsyncpa [#allocation3], 0
    loop: start=0, step=1, limit=6
    $region2: #{tpu_custom_call.1} parent=1 // loop_pre_header
      _
    $region3: #{tpu_custom_call.1} parent=1 // loop_header
      %s13 = sphi 0, %s17
      %p14 = scmp.ge.s32.totalorder %s13, 6
      %s20 = sphi 0, %s32
      %s21 = sphi 0, %s28
      %s22 = sphi 0, %s20
      %s23 = sphi 0, %s21
      %s24 = sphi 0, %s22
      %s25 = sphi 0, %s23
      %s35 = sphi 0, %s37
      %s38 = sphi 0, %s35
      %s39 = sphi 0, %s38
      %s55 = sphi 0, %s39
      %s61 = sphi 0, %s63
      %s64 = sphi 0, %s61
      %s65 = sphi 0, %s64
      %s81 = sphi 0, %s65
      %s87 = sphi 0, %s89
      %s90 = sphi 0, %s87
      %s91 = sphi 0, %s90
      %s107 = sphi 0, %s91
      %s113 = sphi 0, %s115
      %s116 = sphi 0, %s113
      %s117 = sphi 0, %s116
      %s133 = sphi 0, %s117
      %s139 = sphi 0, %s141
      %s142 = sphi 0, %s139
      %s143 = sphi 0, %s142
      %s159 = sphi 0, %s143
      %s163 = sphi 0, %s163
      %s165 = sphi 0, %s163
      %s166 = sphi 0, %s165
      %s180 = sphi 0, %s166
      %s186 = sphi 0, %s188
      %s189 = sphi 0, %s186
      %s190 = sphi 0, %s189
      %s206 = sphi 0, %s190
    $region4: #{tpu_custom_call.1} parent=1 // loop_header_branch
      %16 = sbr.rel (%p14) target = $region8
    $region5: #{tpu_custom_call.1} parent=1 // loop_body
      %s18 = ssub.s32 %s13, 1
      %s19 = ssub.s32 %s13, 2
      %s26 = sadd.s32 1, %s21
      %p27 = scmp.ge.s32.totalorder %s26, 4
      %s28 = scalar_select %p27, 0, %s26
      %s29 = sadd.s32 1, %s20
      %s30 = scalar_select %p27, %s29, %s20
      %p31 = scmp.ge.s32.totalorder %s30, 1
      %s32 = scalar_select %p31, 0, %s30
      %s33 = ssub.s32 %s20, %s32
      %p34 = scmp.eq.s32.totalorder %s33, 0
      %s36 = sadd.s32 %s35, 1
      %s37 = scalar_select %p34, %s35, %s36
      %p40 = pneg %p34
      %p41 = scmp.eq.s32.totalorder %s13, 3
      %p42 = por %p40, %p41
      %p43 = scmp.ne.s32.totalorder %s35, %s38
      %p44 = scmp.eq.s32.totalorder %s13, 0
      %p45 = por %p43, %p44
      %p46 = scmp.ne.s32.totalorder %s35, %s38
      %p47 = scmp.eq.s32.totalorder %s18, 3
      %p48 = por %p46, %p47
      %p49 = scmp.ne.s32.totalorder %s38, %s39
      %p50 = scmp.eq.s32.totalorder %s18, 0
      %p51 = por %p49, %p50
      %p52 = scmp.ne.s32.totalorder %s38, %s39
      %p53 = scmp.eq.s32.totalorder %s19, 3
      %p54 = por %p52, %p53
      %p56 = scmp.ne.s32.totalorder %s39, %s55
      %p57 = scmp.eq.s32.totalorder %s19, 0
      %p58 = por %p56, %p57
      %s59 = ssub.s32 %s21, %s28
      %p60 = scmp.eq.s32.totalorder %s59, 0
      %s62 = sadd.s32 %s61, 1
      %s63 = scalar_select %p60, %s61, %s62
      %p66 = pneg %p60
      %p67 = scmp.eq.s32.totalorder %s13, 3
      %p68 = por %p66, %p67
      %p69 = scmp.ne.s32.totalorder %s61, %s64
      %p70 = scmp.eq.s32.totalorder %s13, 0
      %p71 = por %p69, %p70
      %p72 = scmp.ne.s32.totalorder %s61, %s64
      %p73 = scmp.eq.s32.totalorder %s18, 3
      %p74 = por %p72, %p73
      %p75 = scmp.ne.s32.totalorder %s64, %s65
      %p76 = scmp.eq.s32.totalorder %s18, 0
      %p77 = por %p75, %p76
      %p78 = scmp.ne.s32.totalorder %s64, %s65
      %p79 = scmp.eq.s32.totalorder %s19, 3
      %p80 = por %p78, %p79
      %p82 = scmp.ne.s32.totalorder %s65, %s81
      %p83 = scmp.eq.s32.totalorder %s19, 0
      %p84 = por %p82, %p83
      %s85 = ssub.s32 %s21, %s28
      %p86 = scmp.eq.s32.totalorder %s85, 0
      %s88 = sadd.s32 %s87, 1
      %s89 = scalar_select %p86, %s87, %s88
      %p92 = pneg %p86
      %p93 = scmp.eq.s32.totalorder %s13, 3
      %p94 = por %p92, %p93
      %p95 = scmp.ne.s32.totalorder %s87, %s90
      %p96 = scmp.eq.s32.totalorder %s13, 0
      %p97 = por %p95, %p96
      %p98 = scmp.ne.s32.totalorder %s87, %s90
      %p99 = scmp.eq.s32.totalorder %s18, 3
      %p100 = por %p98, %p99
      %p101 = scmp.ne.s32.totalorder %s90, %s91
      %p102 = scmp.eq.s32.totalorder %s18, 0
      %p103 = por %p101, %p102
      %p104 = scmp.ne.s32.totalorder %s90, %s91
      %p105 = scmp.eq.s32.totalorder %s19, 3
      %p106 = por %p104, %p105
      %p108 = scmp.ne.s32.totalorder %s91, %s107
      %p109 = scmp.eq.s32.totalorder %s19, 0
      %p110 = por %p108, %p109
      %s111 = ssub.s32 %s21, %s28
      %p112 = scmp.eq.s32.totalorder %s111, 0
      %s114 = sadd.s32 %s113, 1
      %s115 = scalar_select %p112, %s113, %s114
      %p118 = pneg %p112
      %p119 = scmp.eq.s32.totalorder %s13, 3
      %p120 = por %p118, %p119
      %p121 = scmp.ne.s32.totalorder %s113, %s116
      %p122 = scmp.eq.s32.totalorder %s13, 0
      %p123 = por %p121, %p122
      %p124 = scmp.ne.s32.totalorder %s113, %s116
      %p125 = scmp.eq.s32.totalorder %s18, 3
      %p126 = por %p124, %p125
      %p127 = scmp.ne.s32.totalorder %s116, %s117
      %p128 = scmp.eq.s32.totalorder %s18, 0
      %p129 = por %p127, %p128
      %p130 = scmp.ne.s32.totalorder %s116, %s117
      %p131 = scmp.eq.s32.totalorder %s19, 3
      %p132 = por %p130, %p131
      %p134 = scmp.ne.s32.totalorder %s117, %s133
      %p135 = scmp.eq.s32.totalorder %s19, 0
      %p136 = por %p134, %p135
      %s137 = ssub.s32 %s21, %s28
      %p138 = scmp.eq.s32.totalorder %s137, 0
      %s140 = sadd.s32 %s139, 1
      %s141 = scalar_select %p138, %s139, %s140
      %p144 = pneg %p138
      %p145 = scmp.eq.s32.totalorder %s13, 3
      %p146 = por %p144, %p145
      %p147 = scmp.ne.s32.totalorder %s139, %s142
      %p148 = scmp.eq.s32.totalorder %s13, 0
      %p149 = por %p147, %p148
      %p150 = scmp.ne.s32.totalorder %s139, %s142
      %p151 = scmp.eq.s32.totalorder %s18, 3
      %p152 = por %p150, %p151
      %p153 = scmp.ne.s32.totalorder %s142, %s143
      %p154 = scmp.eq.s32.totalorder %s18, 0
      %p155 = por %p153, %p154
      %p156 = scmp.ne.s32.totalorder %s142, %s143
      %p157 = scmp.eq.s32.totalorder %s19, 3
      %p158 = por %p156, %p157
      %p160 = scmp.ne.s32.totalorder %s143, %s159
      %p161 = scmp.eq.s32.totalorder %s19, 0
      %p162 = por %p160, %p161
      %s164 = sadd.s32 %s163, 1
      %p167 = scmp.eq.s32.totalorder %s13, 3
      %p168 = scmp.ne.s32.totalorder %s163, %s165
      %p169 = scmp.eq.s32.totalorder %s13, 0
      %p170 = por %p168, %p169
      %p171 = scmp.ne.s32.totalorder %s163, %s165
      %p172 = scmp.eq.s32.totalorder %s18, 3
      %p173 = por %p171, %p172
      %p174 = scmp.ne.s32.totalorder %s165, %s166
      %p175 = scmp.eq.s32.totalorder %s18, 0
      %p176 = por %p174, %p175
      %p177 = scmp.ne.s32.totalorder %s165, %s166
      %p178 = scmp.eq.s32.totalorder %s19, 3
      %p179 = por %p177, %p178
      %p181 = scmp.ne.s32.totalorder %s166, %s180
      %p182 = scmp.eq.s32.totalorder %s19, 0
      %p183 = por %p181, %p182
      %s184 = ssub.s32 %s20, %s32
      %p185 = scmp.eq.s32.totalorder %s184, 0
      %s187 = sadd.s32 %s186, 1
      %s188 = scalar_select %p185, %s186, %s187
      %p191 = pneg %p185
      %p192 = scmp.eq.s32.totalorder %s13, 3
      %p193 = por %p191, %p192
      %p194 = scmp.ne.s32.totalorder %s186, %s189
      %p195 = scmp.eq.s32.totalorder %s13, 0
      %p196 = por %p194, %p195
      %p197 = scmp.ne.s32.totalorder %s186, %s189
      %p198 = scmp.eq.s32.totalorder %s18, 3
      %p199 = por %p197, %p198
      %p200 = scmp.ne.s32.totalorder %s189, %s190
      %p201 = scmp.eq.s32.totalorder %s18, 0
      %p202 = por %p200, %p201
      %p203 = scmp.ne.s32.totalorder %s189, %s190
      %p204 = scmp.eq.s32.totalorder %s19, 3
      %p205 = por %p203, %p204
      %p207 = scmp.ne.s32.totalorder %s190, %s206
      %p208 = scmp.eq.s32.totalorder %s19, 0
      %p209 = por %p207, %p208
      %p210 = scmp.le.s32.totalorder 1, %s13
      %p211 = scmp.lt.s32.totalorder %s13, 5
      %p212 = pnand %p210, %p211
      %p213 = pneg %p212
      // Predicated region
      $region9: #{tpu_custom_call.1} parent=5 // pred_check
        _
      $region10: #{tpu_custom_call.1} parent=5 // pred_check_branch
        %215 = sbr.rel (%p212) target = $region12
      $region11: #{tpu_custom_call.1} parent=5 // pred_region
        %s216 = ssub.s32 %s13, 1
        // Predicated region
        $region13: #{tpu_custom_call.1} parent=11 // pred_check
          %p217 = pneg %p51
        $region14: #{tpu_custom_call.1} parent=11 // pred_check_branch
          %219 = sbr.rel (%p217) target = $region16
        $region15: #{tpu_custom_call.1} parent=11 // pred_region
          %s220 = smul.u32 2, %s22
          %p221 = scmp.lt.s32.totalorder %s220, 1
          %s222 = scalar_select %p221, %s220, 1
          %s223 = smul.addr %s222, 4
          %s224 = scalar_lea.vmem %s0, %s223
          %s225 = smul.u32 2, %s22
        $region16: #{tpu_custom_call.1} parent=11 // pred_fallthru
          _
        // Predicated region
        $region17: #{tpu_custom_call.1} parent=11 // pred_check
          %p226 = pneg %p176
        $region18: #{tpu_custom_call.1} parent=11 // pred_check_branch
          %228 = sbr.rel (%p226) target = $region20
        $region19: #{tpu_custom_call.1} parent=11 // pred_region
          _
        $region20: #{tpu_custom_call.1} parent=11 // pred_fallthru
          _
      $region12: #{tpu_custom_call.1} parent=5 // pred_fallthru
        _
      %p229 = scmp.lt.s32.totalorder %s13, 4
      // Predicated region
      $region21: #{tpu_custom_call.1} parent=5 // pred_check
        %p230 = pneg %p229
      $region22: #{tpu_custom_call.1} parent=5 // pred_check_branch
        %232 = sbr.rel (%p230) target = $region24
      $region23: #{tpu_custom_call.1} parent=5 // pred_region
        // Predicated region
        $region25: #{tpu_custom_call.1} parent=23 // pred_check
          %p233 = pneg %p71
        $region26: #{tpu_custom_call.1} parent=23 // pred_check_branch
          %235 = sbr.rel (%p233) target = $region28
        $region27: #{tpu_custom_call.1} parent=23 // pred_region
          %p236 = scmp.lt.s32.totalorder %s21, 3
          %s237 = scalar_select %p236, %s21, 3
          %s238 = smul.addr %s237, 4
          %s239 = smul.addr %s238, 4
          %s240 = scalar_lea.vmem %s1, %s239
        $region28: #{tpu_custom_call.1} parent=23 // pred_fallthru
          _
        // Predicated region
        $region29: #{tpu_custom_call.1} parent=23 // pred_check
          %p241 = pneg %p97
        $region30: #{tpu_custom_call.1} parent=23 // pred_check_branch
          %243 = sbr.rel (%p241) target = $region32
        $region31: #{tpu_custom_call.1} parent=23 // pred_region
          %p244 = scmp.lt.s32.totalorder %s21, 3
          %s245 = scalar_select %p244, %s21, 3
          %s246 = scalar_lea.vmem %s2, %s245
        $region32: #{tpu_custom_call.1} parent=23 // pred_fallthru
          _
        // Predicated region
        $region33: #{tpu_custom_call.1} parent=23 // pred_check
          %p247 = pneg %p123
        $region34: #{tpu_custom_call.1} parent=23 // pred_check_branch
          %249 = sbr.rel (%p247) target = $region36
        $region35: #{tpu_custom_call.1} parent=23 // pred_region
          %p250 = scmp.lt.s32.totalorder %s21, 3
          %s251 = scalar_select %p250, %s21, 3
          %s252 = smul.addr %s251, 8
          %s253 = scalar_lea.vmem %s3, %s252
        $region36: #{tpu_custom_call.1} parent=23 // pred_fallthru
          _
        // Predicated region
        $region37: #{tpu_custom_call.1} parent=23 // pred_check
          %p254 = pneg %p149
        $region38: #{tpu_custom_call.1} parent=23 // pred_check_branch
          %256 = sbr.rel (%p254) target = $region40
        $region39: #{tpu_custom_call.1} parent=23 // pred_region
          %p257 = scmp.lt.s32.totalorder %s21, 3
          %s258 = scalar_select %p257, %s21, 3
          %s259 = smul.addr %s258, 4
          %s260 = scalar_lea.vmem %s4, %s259
        $region40: #{tpu_custom_call.1} parent=23 // pred_fallthru
          _
      $region24: #{tpu_custom_call.1} parent=5 // pred_fallthru
        _
      %p261 = scmp.le.s32.totalorder 1, %s13
      %p262 = scmp.lt.s32.totalorder %s13, 5
      %p263 = pnand %p261, %p262
      %p264 = pneg %p263
      // Predicated region
      $region41: #{tpu_custom_call.1} parent=5 // pred_check
        _
      $region42: #{tpu_custom_call.1} parent=5 // pred_check_branch
        %266 = sbr.rel (%p263) target = $region44
      $region43: #{tpu_custom_call.1} parent=5 // pred_region
        %s267 = ssub.s32 %s13, 1
        %s268 = smul.u32 2, %s22
        %p269 = scmp.lt.s32.totalorder %s268, 1
        %s270 = scalar_select %p269, %s268, 1
        %s271 = smul.addr %s270, 4
        %s272 = scalar_lea.vmem %s0, %s271
        %p273 = pneg %p51
        %p274 = pneg %p48
        %p275 = scmp.lt.s32.totalorder %s23, 3
        %s276 = scalar_select %p275, %s23, 3
        %s277 = smul.addr %s276, 4
        %s278 = smul.addr %s277, 4
        %s279 = scalar_lea.vmem %s1, %s278
        %p280 = pneg %p77
        %p281 = pneg %p74
        %p282 = scmp.lt.s32.totalorder %s23, 3
        %s283 = scalar_select %p282, %s23, 3
        %s284 = scalar_lea.vmem %s2, %s283
        %p285 = pneg %p103
        %p286 = pneg %p100
        %p287 = scmp.lt.s32.totalorder %s23, 3
        %s288 = scalar_select %p287, %s23, 3
        %s289 = smul.addr %s288, 8
        %s290 = scalar_lea.vmem %s3, %s289
        %p291 = pneg %p129
        %p292 = pneg %p126
        %p293 = scmp.lt.s32.totalorder %s23, 3
        %s294 = scalar_select %p293, %s23, 3
        %s295 = smul.addr %s294, 4
        %s296 = scalar_lea.vmem %s4, %s295
        %p297 = pneg %p155
        %p298 = pneg %p152
        %p299 = pneg %p176
        %p300 = pneg %p173
        %p301 = pneg %p202
        %p302 = pneg %p199
        %s303 = smul.u32 2, %s22
        %p304 = scmp.lt.s32.totalorder %s303, 1
        %s305 = scalar_select %p304, %s303, 1
        %s306 = smul.addr %s305, 4
        %s307 = scalar_lea.vmem %s0, %s306
        %s308 = smul.u32 2, %s22
        %p309 = scmp.lt.s32.totalorder %s23, 3
        %s310 = scalar_select %p309, %s23, 3
        %s311 = smul.addr %s310, 4
        %s312 = smul.addr %s311, 4
        %s313 = scalar_lea.vmem %s1, %s312
        %p314 = scmp.lt.s32.totalorder %s23, 3
        %s315 = scalar_select %p314, %s23, 3
        %s316 = scalar_lea.vmem %s2, %s315
        %p317 = scmp.lt.s32.totalorder %s23, 3
        %s318 = scalar_select %p317, %s23, 3
        %s319 = smul.addr %s318, 8
        %s320 = scalar_lea.vmem %s3, %s319
        %p321 = scmp.lt.s32.totalorder %s23, 3
        %s322 = scalar_select %p321, %s23, 3
        %s323 = smul.addr %s322, 4
        %s324 = scalar_lea.vmem %s4, %s323
        %s325 = smul.u32 2, %s22
        %v327 = vld [vmem:[%s307] sm:$0xf]
        %v328 = vld [vmem:[%s307 + $0x4] sm:$0xf]
        %v329 = vld [vmem:[%s313] sm:$0xf]
        %v330 = vld [vmem:[%s313 + $0x4] sm:$0xf]
        %v331 = vld [vmem:[%s313 + $0x8] sm:$0xf]
        %v332 = vld [vmem:[%s313 + $0xc] sm:$0xf]
        %v333 = vld [vmem:[%s316] sm:$0x1]
        %v335 = vlaneseq
        %v336 = vshrl.u32 %v335, 7
        %v337 = vsub.s32 0, %v336
        %v338 = vrot.slane %v333, %v337
        %v342 = vunpack.c.l.b16 %v327
        %v343 = vunpack.c.l.b16 %v328
        %v344 = vpack.c.b16 %v343, %v342
        %v349 = vunpack.c.l.b16 %v329
        %v350 = vunpack.c.l.b16 %v330
        %v351 = vunpack.c.l.b16 %v331
        %v352 = vunpack.c.l.b16 %v332
        %v353 = vpack.c.b16 %v350, %v349
        %v354 = vpack.c.b16 %v352, %v351
        %vm357 = vcmask 261120
        %v359 = vsel %vm357, %v344, 0
        %361 = vmatprep.subr.bf16.mxu0 0
        %362 = vmatpush1.bf16.msra.mxu0 %v353
        %363 = vmatprep.subr.bf16.mxu0 0
        %364 = vmatpush1.bf16.msra.mxu0 %v354
        %365 = vmatprep.subr.bf16.mxu0 0
        %366 = vmatpush1.bf16.msra.mxu0 0
        %367 = vmatprep.subr.bf16.mxu0 0
        %368 = vmatpush1.bf16.msra.mxu0 0
        %369 = vmatprep.subr.bf16.mxu0 0
        %370 = vmatpush1.bf16.msra.mxu0 0
        %371 = vmatprep.subr.bf16.mxu0 0
        %372 = vmatpush1.bf16.msra.mxu0 0
        %373 = vmatprep.subr.bf16.mxu0 0
        %374 = vmatpush1.bf16.msra.mxu0 0
        %375 = vmatprep.subr.bf16.mxu0 0
        %376 = vmatpush1.bf16.msra.mxu0 0
        %377 = vmatprep.subr.bf16.mxu0 0
        %378 = vmatpush1.bf16.msra.mxu0 0
        %379 = vmatprep.subr.bf16.mxu0 0
        %380 = vmatpush1.bf16.msra.mxu0 0
        %381 = vmatprep.subr.bf16.mxu0 0
        %382 = vmatpush1.bf16.msra.mxu0 0
        %383 = vmatprep.subr.bf16.mxu0 0
        %384 = vmatpush1.bf16.msra.mxu0 0
        %385 = vmatprep.subr.bf16.mxu0 0
        %386 = vmatpush1.bf16.msra.mxu0 0
        %387 = vmatprep.subr.bf16.mxu0 0
        %388 = vmatpush1.bf16.msra.mxu0 0
        %389 = vmatprep.subr.bf16.mxu0 0
        %390 = vmatpush1.bf16.msra.mxu0 0
        %391 = vmatprep.subr.bf16.mxu0 0
        %392 = vmatpush1.bf16.msra.mxu0 0
        %393 = vmatprep.mubr.bf16.mxu0 0
        %394 = vmatmul.mubr.bf16.gmra.mrb[0].mxu0 %v359
        %v395 = vpop.f32.mrb[0].mxu0
        %v396 = vadd.f32 %v338, %v395
        %v397 = vpop.f32.mrb[0].mxu0
        %v398 = vpop.f32.mrb[0].mxu0
        %v399 = vadd.f32 %v338, %v398
        %v400 = vpop.f32.mrb[0].mxu0
        %401 = vdwg.mxu0
        %v402 = vld [vmem:[%s320] sm:$0xff]
        %v403 = vld [vmem:[%s324] sm:$0xf]
        %p404 = scmp.eq.s32.totalorder %s23, 0
        // Predicated region
        $region45: #{tpu_custom_call.1} parent=43 // pred_check
          %p405 = pneg %p404
        $region46: #{tpu_custom_call.1} parent=43 // pred_check_branch
          %407 = sbr.rel (%p405) target = $region48
        $region47: #{tpu_custom_call.1} parent=43 // pred_region
          %v408 = vld [vmem:[%s5] sm:$0x1]
          %v410 = vlaneseq
          %v411 = vshrl.u32 %v410, 7
          %v412 = vsub.s32 0, %v411
          %v413 = vrot.slane %v408, %v412
          %415 = vst.msk [vmem:[#allocation2] sm:$0xff] %vm357, %v413
          %416 = vst.msk [vmem:[#allocation2 + $0x8] sm:$0xff] %vm357, %v413
        $region48: #{tpu_custom_call.1} parent=43 // pred_fallthru
          _
        %v417 = vmul.f32 %v396, 0.35355338
        %v418 = vpack.c.bf16 %v417, %v417
        %v419 = vpack.c.bf16 %v396, %v396
        %421 = vrot.lane.b32.xlu0 %v419, 120
        %v422 = vpop.permute.xlu0 %421
        %vm423 = vcmask 64512
        %v425 = vsel %vm423, %v418, 0
        %v428 = vsel %vm423, %v422, 0
        %430 = vmatprep.subr.bf16.mxu0 0
        %431 = vmatpush1.bf16.xpose.msra.mxu0 %v428
        %432 = vmatprep.subr.bf16.mxu0 0
        %433 = vmatpush1.bf16.xpose.msra.mxu0 0
        %434 = vmatprep.subr.bf16.mxu0 0
        %435 = vmatpush1.bf16.xpose.msra.mxu0 0
        %436 = vmatprep.subr.bf16.mxu0 0
        %437 = vmatpush1.bf16.xpose.msra.mxu0 0
        %438 = vmatprep.subr.bf16.mxu0 0
        %439 = vmatpush1.bf16.xpose.msra.mxu0 0
        %440 = vmatprep.subr.bf16.mxu0 0
        %441 = vmatpush1.bf16.xpose.msra.mxu0 0
        %442 = vmatprep.subr.bf16.mxu0 0
        %443 = vmatpush1.bf16.xpose.msra.mxu0 0
        %444 = vmatprep.subr.bf16.mxu0 0
        %445 = vmatpush1.bf16.xpose.msra.mxu0 0
        %446 = vmatprep.subr.bf16.mxu0 0
        %447 = vmatpush1.bf16.xpose.msra.mxu0 0
        %448 = vmatprep.subr.bf16.mxu0 0
        %449 = vmatpush1.bf16.xpose.msra.mxu0 0
        %450 = vmatprep.subr.bf16.mxu0 0
        %451 = vmatpush1.bf16.xpose.msra.mxu0 0
        %452 = vmatprep.subr.bf16.mxu0 0
        %453 = vmatpush1.bf16.xpose.msra.mxu0 0
        %454 = vmatprep.subr.bf16.mxu0 0
        %455 = vmatpush1.bf16.xpose.msra.mxu0 0
        %456 = vmatprep.subr.bf16.mxu0 0
        %457 = vmatpush1.bf16.xpose.msra.mxu0 0
        %458 = vmatprep.subr.bf16.mxu0 0
        %459 = vmatpush1.bf16.xpose.msra.mxu0 0
        %460 = vmatprep.subr.bf16.mxu0 0
        %461 = vmatpush1.bf16.xpose.msra.mxu0 0
        %462 = vmatprep.mubr.bf16.mxu0 0
        %463 = vmatmul.mubr.bf16.gmra.mrb[0].mxu0 %v425
        %v464 = vpop.f32.mrb[0].mxu0
        %v465 = vadd.f32 %v402, %v464
        %v466 = vpop.f32.mrb[0].mxu0
        %v467 = vpop.f32.mrb[0].mxu0
        %v468 = vpop.f32.mrb[0].mxu0
        %469 = vdwg.mxu0
        %v470 = vsel %vm423, %v465, -inf
        %471 = vmax.xlane.f32.xlu0 %v470
        %v472 = vpop.xlane.xlu0 %471
        %v473 = vsub.f32 %v465, %v472
        %v474 = vmul.f32 %v473, 1.442695
        %v475 = vpow.pop %v474
        %v476 = vsel %vm423, %v475, 0.0
        %477 = vadd.xlane.f32.xlu0 %v476
        %v478 = vpop.xlane.xlu0 %477
        %v479 = vpack.c.bf16 %v475, %v475
        %480 = vrot.lane.b32.xlu0 %v419, 112
        %v481 = vpop.permute.xlu0 %480
        %v483 = vsel %vm423, %v479, 0
        %vm485 = vcmask 1043456
        %v487 = vsel %vm485, %v481, 0
        %489 = vmatprep.subr.bf16.mxu0 0
        %490 = vmatpush1.bf16.msra.mxu0 %v487
        %491 = vmatprep.subr.bf16.mxu0 0
        %492 = vmatpush1.bf16.msra.mxu0 0
        %493 = vmatprep.subr.bf16.mxu0 0
        %494 = vmatpush1.bf16.msra.mxu0 0
        %495 = vmatprep.subr.bf16.mxu0 0
        %496 = vmatpush1.bf16.msra.mxu0 0
        %497 = vmatprep.subr.bf16.mxu0 0
        %498 = vmatpush1.bf16.msra.mxu0 0
        %499 = vmatprep.subr.bf16.mxu0 0
        %500 = vmatpush1.bf16.msra.mxu0 0
        %501 = vmatprep.subr.bf16.mxu0 0
        %502 = vmatpush1.bf16.msra.mxu0 0
        %503 = vmatprep.subr.bf16.mxu0 0
        %504 = vmatpush1.bf16.msra.mxu0 0
        %505 = vmatprep.subr.bf16.mxu0 0
        %506 = vmatpush1.bf16.msra.mxu0 0
        %507 = vmatprep.subr.bf16.mxu0 0
        %508 = vmatpush1.bf16.msra.mxu0 0
        %509 = vmatprep.subr.bf16.mxu0 0
        %510 = vmatpush1.bf16.msra.mxu0 0
        %511 = vmatprep.subr.bf16.mxu0 0
        %512 = vmatpush1.bf16.msra.mxu0 0
        %513 = vmatprep.subr.bf16.mxu0 0
        %514 = vmatpush1.bf16.msra.mxu0 0
        %515 = vmatprep.subr.bf16.mxu0 0
        %516 = vmatpush1.bf16.msra.mxu0 0
        %517 = vmatprep.subr.bf16.mxu0 0
        %518 = vmatpush1.bf16.msra.mxu0 0
        %519 = vmatprep.subr.bf16.mxu0 0
        %520 = vmatpush1.bf16.msra.mxu0 0
        %521 = vmatprep.mubr.bf16.mxu0 0
        %522 = vmatmul.mubr.bf16.gmra.mrb[0].mxu0 %v483
        %v523 = vpop.f32.mrb[0].mxu0
        %v524 = vadd.f32 0.0, %v523
        %v525 = vpop.f32.mrb[0].mxu0
        %v526 = vpop.f32.mrb[0].mxu0
        %v527 = vpop.f32.mrb[0].mxu0
        %528 = vdwg.mxu0
        %v529 = vrcp.pop %v478
        %v530 = vmul.f32 %v524, %v529
        %v531 = vpack.c.bf16 %v530, %v530
        %v533 = vsel %vm423, %v531, 0
        %v536 = vsel %vm485, %v403, 0
        %538 = vmatprep.subr.bf16.mxu0 0
        %539 = vmatpush1.bf16.msra.mxu0 %v536
        %540 = vmatprep.subr.bf16.mxu0 0
        %541 = vmatpush1.bf16.msra.mxu0 0
        %542 = vmatprep.subr.bf16.mxu0 0
        %543 = vmatpush1.bf16.msra.mxu0 0
        %544 = vmatprep.subr.bf16.mxu0 0
        %545 = vmatpush1.bf16.msra.mxu0 0
        %546 = vmatprep.subr.bf16.mxu0 0
        %547 = vmatpush1.bf16.msra.mxu0 0
        %548 = vmatprep.subr.bf16.mxu0 0
        %549 = vmatpush1.bf16.msra.mxu0 0
        %550 = vmatprep.subr.bf16.mxu0 0
        %551 = vmatpush1.bf16.msra.mxu0 0
        %552 = vmatprep.subr.bf16.mxu0 0
        %553 = vmatpush1.bf16.msra.mxu0 0
        %554 = vmatprep.subr.bf16.mxu0 0
        %555 = vmatpush1.bf16.msra.mxu0 0
        %556 = vmatprep.subr.bf16.mxu0 0
        %557 = vmatpush1.bf16.msra.mxu0 0
        %558 = vmatprep.subr.bf16.mxu0 0
        %559 = vmatpush1.bf16.msra.mxu0 0
        %560 = vmatprep.subr.bf16.mxu0 0
        %561 = vmatpush1.bf16.msra.mxu0 0
        %562 = vmatprep.subr.bf16.mxu0 0
        %563 = vmatpush1.bf16.msra.mxu0 0
        %564 = vmatprep.subr.bf16.mxu0 0
        %565 = vmatpush1.bf16.msra.mxu0 0
        %566 = vmatprep.subr.bf16.mxu0 0
        %567 = vmatpush1.bf16.msra.mxu0 0
        %568 = vmatprep.subr.bf16.mxu0 0
        %569 = vmatpush1.bf16.msra.mxu0 0
        %570 = vmatprep.mubr.bf16.mxu0 0
        %571 = vmatmul.mubr.bf16.gmra.mrb[0].mxu0 %v533
        %v572 = vpop.f32.mrb[0].mxu0
        %v573 = vadd.f32 0.0, %v572
        %v574 = vpop.f32.mrb[0].mxu0
        %v575 = vpop.f32.mrb[0].mxu0
        %v576 = vpop.f32.mrb[0].mxu0
        %577 = vdwg.mxu0
        %v578 = vld [vmem:[#allocation2] sm:$0xff]
        %v579 = vadd.f32 %v578, %v573
        %580 = vst.msk [vmem:[#allocation2] sm:$0xff] %vm357, %v579
        %v581 = vmul.f32 %v399, 0.35355338
        %v582 = vpack.c.bf16 %v581, %v581
        %v583 = vpack.c.bf16 %v399, %v399
        %585 = vrot.lane.b32.xlu0 %v583, 120
        %v586 = vpop.permute.xlu0 %585
        %v588 = vsel %vm423, %v582, 0
        %v591 = vsel %vm423, %v586, 0
        %593 = vmatprep.subr.bf16.mxu0 0
        %594 = vmatpush1.bf16.xpose.msra.mxu0 %v591
        %595 = vmatprep.subr.bf16.mxu0 0
        %596 = vmatpush1.bf16.xpose.msra.mxu0 0
        %597 = vmatprep.subr.bf16.mxu0 0
        %598 = vmatpush1.bf16.xpose.msra.mxu0 0
        %599 = vmatprep.subr.bf16.mxu0 0
        %600 = vmatpush1.bf16.xpose.msra.mxu0 0
        %601 = vmatprep.subr.bf16.mxu0 0
        %602 = vmatpush1.bf16.xpose.msra.mxu0 0
        %603 = vmatprep.subr.bf16.mxu0 0
        %604 = vmatpush1.bf16.xpose.msra.mxu0 0
        %605 = vmatprep.subr.bf16.mxu0 0
        %606 = vmatpush1.bf16.xpose.msra.mxu0 0
        %607 = vmatprep.subr.bf16.mxu0 0
        %608 = vmatpush1.bf16.xpose.msra.mxu0 0
        %609 = vmatprep.subr.bf16.mxu0 0
        %610 = vmatpush1.bf16.xpose.msra.mxu0 0
        %611 = vmatprep.subr.bf16.mxu0 0
        %612 = vmatpush1.bf16.xpose.msra.mxu0 0
        %613 = vmatprep.subr.bf16.mxu0 0
        %614 = vmatpush1.bf16.xpose.msra.mxu0 0
        %615 = vmatprep.subr.bf16.mxu0 0
        %616 = vmatpush1.bf16.xpose.msra.mxu0 0
        %617 = vmatprep.subr.bf16.mxu0 0
        %618 = vmatpush1.bf16.xpose.msra.mxu0 0
        %619 = vmatprep.subr.bf16.mxu0 0
        %620 = vmatpush1.bf16.xpose.msra.mxu0 0
        %621 = vmatprep.subr.bf16.mxu0 0
        %622 = vmatpush1.bf16.xpose.msra.mxu0 0
        %623 = vmatprep.subr.bf16.mxu0 0
        %624 = vmatpush1.bf16.xpose.msra.mxu0 0
        %625 = vmatprep.mubr.bf16.mxu0 0
        %626 = vmatmul.mubr.bf16.gmra.mrb[0].mxu0 %v588
        %v627 = vpop.f32.mrb[0].mxu0
        %v628 = vadd.f32 %v402, %v627
        %v629 = vpop.f32.mrb[0].mxu0
        %v630 = vpop.f32.mrb[0].mxu0
        %v631 = vpop.f32.mrb[0].mxu0
        %632 = vdwg.mxu0
        %v633 = vsel %vm423, %v628, -inf
        %634 = vmax.xlane.f32.xlu0 %v633
        %v635 = vpop.xlane.xlu0 %634
        %v636 = vsub.f32 %v628, %v635
        %v637 = vmul.f32 %v636, 1.442695
        %v638 = vpow.pop %v637
        %v639 = vsel %vm423, %v638, 0.0
        %640 = vadd.xlane.f32.xlu0 %v639
        %v641 = vpop.xlane.xlu0 %640
        %v642 = vpack.c.bf16 %v638, %v638
        %643 = vrot.lane.b32.xlu0 %v583, 112
        %v644 = vpop.permute.xlu0 %643
        %v646 = vsel %vm423, %v642, 0
        %v649 = vsel %vm485, %v644, 0
        %651 = vmatprep.subr.bf16.mxu0 0
        %652 = vmatpush1.bf16.msra.mxu0 %v649
        %653 = vmatprep.subr.bf16.mxu0 0
        %654 = vmatpush1.bf16.msra.mxu0 0
        %655 = vmatprep.subr.bf16.mxu0 0
        %656 = vmatpush1.bf16.msra.mxu0 0
        %657 = vmatprep.subr.bf16.mxu0 0
        %658 = vmatpush1.bf16.msra.mxu0 0
        %659 = vmatprep.subr.bf16.mxu0 0
        %660 = vmatpush1.bf16.msra.mxu0 0
        %661 = vmatprep.subr.bf16.mxu0 0
        %662 = vmatpush1.bf16.msra.mxu0 0
        %663 = vmatprep.subr.bf16.mxu0 0
        %664 = vmatpush1.bf16.msra.mxu0 0
        %665 = vmatprep.subr.bf16.mxu0 0
        %666 = vmatpush1.bf16.msra.mxu0 0
        %667 = vmatprep.subr.bf16.mxu0 0
        %668 = vmatpush1.bf16.msra.mxu0 0
        %669 = vmatprep.subr.bf16.mxu0 0
        %670 = vmatpush1.bf16.msra.mxu0 0
        %671 = vmatprep.subr.bf16.mxu0 0
        %672 = vmatpush1.bf16.msra.mxu0 0
        %673 = vmatprep.subr.bf16.mxu0 0
        %674 = vmatpush1.bf16.msra.mxu0 0
        %675 = vmatprep.subr.bf16.mxu0 0
        %676 = vmatpush1.bf16.msra.mxu0 0
        %677 = vmatprep.subr.bf16.mxu0 0
        %678 = vmatpush1.bf16.msra.mxu0 0
        %679 = vmatprep.subr.bf16.mxu0 0
        %680 = vmatpush1.bf16.msra.mxu0 0
        %681 = vmatprep.subr.bf16.mxu0 0
        %682 = vmatpush1.bf16.msra.mxu0 0
        %683 = vmatprep.mubr.bf16.mxu0 0
        %684 = vmatmul.mubr.bf16.gmra.mrb[0].mxu0 %v646
        %v685 = vpop.f32.mrb[0].mxu0
        %v686 = vadd.f32 0.0, %v685
        %v687 = vpop.f32.mrb[0].mxu0
        %v688 = vpop.f32.mrb[0].mxu0
        %v689 = vpop.f32.mrb[0].mxu0
        %690 = vdwg.mxu0
        %v691 = vrcp.pop %v641
        %v692 = vmul.f32 %v686, %v691
        %v693 = vpack.c.bf16 %v692, %v692
        %v695 = vsel %vm423, %v693, 0
        %697 = vmatprep.subr.bf16.mxu0 0
        %698 = vmatpush1.bf16.msra.mxu0 %v536
        %699 = vmatprep.subr.bf16.mxu0 0
        %700 = vmatpush1.bf16.msra.mxu0 0
        %701 = vmatprep.subr.bf16.mxu0 0
        %702 = vmatpush1.bf16.msra.mxu0 0
        %703 = vmatprep.subr.bf16.mxu0 0
        %704 = vmatpush1.bf16.msra.mxu0 0
        %705 = vmatprep.subr.bf16.mxu0 0
        %706 = vmatpush1.bf16.msra.mxu0 0
        %707 = vmatprep.subr.bf16.mxu0 0
        %708 = vmatpush1.bf16.msra.mxu0 0
        %709 = vmatprep.subr.bf16.mxu0 0
        %710 = vmatpush1.bf16.msra.mxu0 0
        %711 = vmatprep.subr.bf16.mxu0 0
        %712 = vmatpush1.bf16.msra.mxu0 0
        %713 = vmatprep.subr.bf16.mxu0 0
        %714 = vmatpush1.bf16.msra.mxu0 0
        %715 = vmatprep.subr.bf16.mxu0 0
        %716 = vmatpush1.bf16.msra.mxu0 0
        %717 = vmatprep.subr.bf16.mxu0 0
        %718 = vmatpush1.bf16.msra.mxu0 0
        %719 = vmatprep.subr.bf16.mxu0 0
        %720 = vmatpush1.bf16.msra.mxu0 0
        %721 = vmatprep.subr.bf16.mxu0 0
        %722 = vmatpush1.bf16.msra.mxu0 0
        %723 = vmatprep.subr.bf16.mxu0 0
        %724 = vmatpush1.bf16.msra.mxu0 0
        %725 = vmatprep.subr.bf16.mxu0 0
        %726 = vmatpush1.bf16.msra.mxu0 0
        %727 = vmatprep.subr.bf16.mxu0 0
        %728 = vmatpush1.bf16.msra.mxu0 0
        %729 = vmatprep.mubr.bf16.mxu0 0
        %730 = vmatmul.mubr.bf16.gmra.mrb[0].mxu0 %v695
        %v731 = vpop.f32.mrb[0].mxu0
        %v732 = vadd.f32 0.0, %v731
        %v733 = vpop.f32.mrb[0].mxu0
        %v734 = vpop.f32.mrb[0].mxu0
        %v735 = vpop.f32.mrb[0].mxu0
        %736 = vdwg.mxu0
        %v737 = vld [vmem:[#allocation2 + $0x8] sm:$0xff]
        %v738 = vadd.f32 %v737, %v732
        %739 = vst.msk [vmem:[#allocation2 + $0x8] sm:$0xff] %vm357, %v738
        // Predicated region
        $region49: #{tpu_custom_call.1} parent=43 // pred_check
          %p740 = pneg %p199
        $region50: #{tpu_custom_call.1} parent=43 // pred_check_branch
          %742 = sbr.rel (%p740) target = $region52
        $region51: #{tpu_custom_call.1} parent=43 // pred_region
          %s743 = smul.u32 2, %s22
          %s745 = ssub.s32 256, 256
          %746 = vsyncadd [#allocation3], %s745
          %s747 = smul.addr %s743, 128
          %s748 = scalar_lea.hbm %s6, %s747
          %s749 = sshll.u32 [#allocation2], 4
          %s750 = int_to_ptr.vmem [resolvable:$true] %s749
          %755 = dma.vmem_to_hbm [thread:$0]  %s750, 256, %s748, [#allocation3], 128, 128, 8
        $region52: #{tpu_custom_call.1} parent=43 // pred_fallthru
          _
        // Predicated region
        $region53: #{tpu_custom_call.1} parent=43 // pred_check
          %p756 = pneg %p199
        $region54: #{tpu_custom_call.1} parent=43 // pred_check_branch
          %758 = sbr.rel (%p756) target = $region56
        $region55: #{tpu_custom_call.1} parent=43 // pred_region
          %759 = dma.done [#allocation3], 256
        $region56: #{tpu_custom_call.1} parent=43 // pred_fallthru
          _
      $region44: #{tpu_custom_call.1} parent=5 // pred_fallthru
        _
      %p760 = scmp.le.s32.totalorder 2, %s13
      // Predicated region
      $region57: #{tpu_custom_call.1} parent=5 // pred_check
        %p761 = pneg %p760
      $region58: #{tpu_custom_call.1} parent=5 // pred_check_branch
        %763 = sbr.rel (%p761) target = $region60
      $region59: #{tpu_custom_call.1} parent=5 // pred_region
        %s764 = ssub.s32 %s13, 2
      $region60: #{tpu_custom_call.1} parent=5 // pred_fallthru
        _
    $region6: #{tpu_custom_call.1} parent=1 // loop_footer
      %s17 = sadd.s32 1, %s13
    $region7: #{tpu_custom_call.1} parent=1 // loop_footer_branch
      %12 = sbr.rel target = $region3
    $region8: #{tpu_custom_call.1} parent=1 // loop_exit
      _
    %765 = vsyncpa [#allocation3], 1
    %s766 = scalar_lea.sflag [#allocation3], 1
    %767 = vsyncpa %s766, 1

</llo_original>
